<compile_context>
chip_gen: v5e
topology: v5e:2x2
jax: 0.10.0
libtpu: 0.0.40
codegen_flags: <defaults>
</compile_context>

<pallas_src>
import math
import functools

import jax
import jax.numpy as jnp
from jax import lax
from jax.experimental import pallas as pl
from jax.experimental.pallas import tpu as pltpu


# lowbias32-style hash constants
_K1 = 0x9E3779B1
_K2 = 0x85EBCA77
_M1 = 0x7FEB352D
_M2 = 0x846CA68B


# ---------------------------------------------------------------------------
# Kernels
# ---------------------------------------------------------------------------
def _pe_add_kernel(x_ref, pe_ref, o_ref):
    # eval-mode forward: x + pe (dropout is identity in eval)
    o_ref[...] = x_ref[...] + pe_ref[...]


def _pe_add_dropout_kernel(seed_ref, x_ref, pe_ref, o_ref, *, threshold, scale):
    # training-mode forward: dropout(x + pe), keep prob (1 - p), scaled.
    tb, tc = x_ref.shape
    y = x_ref[...] + pe_ref[...]

    # Stateless counter-based PRNG: hash (global_row, global_col, seed) into
    # uniform uint32 bits. Pure VPU integer ops -> portable and every grid
    # step is independent.
    i = pl.program_id(0)
    j = pl.program_id(1)
    rows = (lax.broadcasted_iota(jnp.int32, (tb, tc), 0) + i * tb).astype(jnp.uint32)
    cols = (lax.broadcasted_iota(jnp.int32, (tb, tc), 1) + j * tc).astype(jnp.uint32)
    seed = seed_ref[0].astype(jnp.uint32)

    h = rows * jnp.uint32(_K1) + cols * jnp.uint32(_K2) + seed
    h = h ^ (h >> 16)
    h = h * jnp.uint32(_M1)
    h = h ^ (h >> 15)
    h = h * jnp.uint32(_M2)
    h = h ^ (h >> 16)

    # integer-threshold compare: drop iff h < round(p * 2^32)
    keep = h >= jnp.uint32(threshold)
    o_ref[...] = jnp.where(
        keep, y * jnp.asarray(scale, y.dtype), jnp.zeros_like(y)
    ).astype(o_ref.dtype)


# ---------------------------------------------------------------------------
# Parameter init (matches nn.Module.__init__ sinusoidal init, deterministic)
# ---------------------------------------------------------------------------
def make_sinusoidal_pe(max_len, d_model, dtype=jnp.float32):
    position = jnp.arange(0, max_len, dtype=jnp.float32)[:, None]
    div_term = jnp.exp(
        jnp.arange(0, d_model, 2, dtype=jnp.float32)
        * -(math.log(10000.0) / d_model)
    )
    pe = jnp.zeros((max_len, d_model), dtype=jnp.float32)
    pe = pe.at[:, 0::2].set(jnp.sin(position * div_term))
    pe = pe.at[:, 1::2].set(jnp.cos(position * div_term))
    return pe.astype(dtype)  # (max_len, d_model)


# ---------------------------------------------------------------------------
# Tile selection (lane-dense, ~2 MiB blocks, VMEM-safe on v5e/v6e/v7x)
# ---------------------------------------------------------------------------
def _choose_tiles(n_rows, n_cols, itemsize, target_bytes=2 * 1024 * 1024):
    target_elems = max(128, target_bytes // itemsize)
    if n_cols <= target_elems:
        tc = n_cols                      # full row -> lane-dense, equals dim
    else:
        tc = max(128, (target_elems // 128) * 128)  # multiple of 128 lanes
    tb = max(1, target_elems // tc)
    if tb >= n_rows:
        tb = n_rows                      # equals full dim
    else:
        tb = min(n_rows, max(8, (tb // 8) * 8))     # multiple of 8 sublanes
    return tb, tc


# ---------------------------------------------------------------------------
# Wrapper
# ---------------------------------------------------------------------------
def lcos_positional_encoding(x, pe, *, p=0.1, training=False, seed=0):
    """x: (B, L, D); pe: (max_len, D). Returns dropout(x + pe[:L])."""
    B, L, D = x.shape
    assert pe.shape[0] >= L and pe.shape[1] == D
    n = L * D

    # glue: slice PE to seq length, match x dtype, flatten to lane-dense 2D.
    pe_row = pe[:L, :].astype(x.dtype).reshape(1, n)
    x2 = x.reshape(B, n)

    tb, tc = _choose_tiles(B, n, jnp.dtype(x.dtype).itemsize)
    grid = (pl.cdiv(B, tb), pl.cdiv(n, tc))

    x_spec = pl.BlockSpec((tb, tc), lambda i, j, *_: (i, j))
    pe_spec = pl.BlockSpec((1, tc), lambda i, j, *_: (0, j))
    out_spec = pl.BlockSpec((tb, tc), lambda i, j, *_: (i, j))
    out_shape = jax.ShapeDtypeStruct((B, n), x.dtype)
    cparams = pltpu.CompilerParams(dimension_semantics=("parallel", "parallel"))

    if (not training) or p == 0.0:
        out2 = pl.pallas_call(
            _pe_add_kernel,
            out_shape=out_shape,
            grid_spec=pltpu.PrefetchScalarGridSpec(
                num_scalar_prefetch=0,
                grid=grid,
                in_specs=[x_spec, pe_spec],
                out_specs=out_spec,
            ),
            compiler_params=cparams,
        )(x2, pe_row)
        return out2.reshape(B, L, D)

    assert 0.0 < p < 1.0, "dropout prob must be in [0, 1) for training"
    threshold = min(int(round(p * 4294967296.0)), 4294967295)
    scale = 1.0 / (1.0 - p)
    seed_arr = jnp.asarray([seed], dtype=jnp.int32)

    out2 = pl.pallas_call(
        functools.partial(_pe_add_dropout_kernel, threshold=threshold, scale=scale),
        out_shape=out_shape,
        grid_spec=pltpu.PrefetchScalarGridSpec(
            num_scalar_prefetch=1,
            grid=grid,
            in_specs=[x_spec, pe_spec],
            out_specs=out_spec,
        ),
        compiler_params=cparams,
    )(seed_arr, x2, pe_row)
    return out2.reshape(B, L, D)


# ---------------------------------------------------------------------------
# Demo / correctness check
# ---------------------------------------------------------------------------
if __name__ == "__main__":
    d_model = 32
    max_len = 64
    B, L = 2, 8
    p = 0.1

    key = jax.random.PRNGKey(0)
    x = jax.random.normal(key, (B, L, d_model), dtype=jnp.float32)
    pe = make_sinusoidal_pe(max_len, d_model)

    ref = x + pe[None, :L, :]

    # eval-mode forward (dropout = identity): exact reference check
    out = jax.block_until_ready(
        lcos_positional_encoding(x, pe, p=p, training=False))
    assert out.shape == (B, L, d_model)
    assert jnp.allclose(out, ref, atol=1e-6, rtol=1e-6), "mismatch vs reference"

    # training-mode forward: each element is either 0 or (x + pe) / (1 - p)
    out_tr = jax.block_until_ready(
        lcos_positional_encoding(x, pe, p=p, training=True, seed=123))
    assert out_tr.shape == (B, L, d_model)
    scaled = ref / (1.0 - p)
    assert bool(jnp.all((out_tr == 0) | (jnp.abs(out_tr - scaled) < 1e-5)))
    drop_frac = float(jnp.mean((out_tr == 0).astype(jnp.float32)))
    assert 0.0 <= drop_frac <= 0.5  # loose sanity: roughly p of elems dropped

    print("KERNEL_OK")
</pallas_src>

<mosaic_0001>
module attributes {stable_mosaic.version = 11 : i64} {
  func.func @_pe_add_kernel(%arg0: i32, %arg1: i32, %arg2: memref<2x256xf32, #tpu.memory_space<vmem>>, %arg3: memref<1x256xf32, #tpu.memory_space<vmem>>, %arg4: memref<2x256xf32, #tpu.memory_space<vmem>>) attributes {dimension_semantics = [#tpu.dimension_semantics<parallel>, #tpu.dimension_semantics<parallel>], iteration_bounds = array<i64: 1, 1>, scalar_prefetch = 0 : i64, scratch_operands = 0 : i64, tpu.core_type = #tpu.core_type<tc>, window_params = [{transform_indices = @transform_0, window_bounds = array<i64: 2, 256>}, {transform_indices = @transform_1, window_bounds = array<i64: 1, 256>}, {transform_indices = @transform_2, window_bounds = array<i64: 2, 256>}]} {
    %c0 = arith.constant 0 : index
    %c0_0 = arith.constant 0 : index
    %0 = vector.load %arg2[%c0, %c0_0] : memref<2x256xf32, #tpu.memory_space<vmem>>, vector<2x256xf32>
    %c0_1 = arith.constant 0 : index
    %c0_2 = arith.constant 0 : index
    %1 = vector.load %arg3[%c0_1, %c0_2] : memref<1x256xf32, #tpu.memory_space<vmem>>, vector<1x256xf32>
    %2 = vector.broadcast %1 : vector<1x256xf32> to vector<2x256xf32>
    %3 = arith.addf %0, %2 : vector<2x256xf32>
    %c0_3 = arith.constant 0 : index
    %c0_4 = arith.constant 0 : index
    %4 = vector.load %arg4[%c0_3, %c0_4] : memref<2x256xf32, #tpu.memory_space<vmem>>, vector<2x256xf32>
    tpu.vector_store %arg4[%c0_3, %c0_4], %3 {strides = array<i32>} : memref<2x256xf32, #tpu.memory_space<vmem>>, vector<2x256xf32>,
    return
  }
  func.func @transform_0(%arg0: i32, %arg1: i32) -> (i32, i32) {
    %c0_i32 = arith.constant 0 : i32
    return %arg0, %arg1 : i32, i32
  }
  func.func @transform_1(%arg0: i32, %arg1: i32) -> (i32, i32) {
    %c0_i32 = arith.constant 0 : i32
    %c0_i32_0 = arith.constant 0 : i32
    return %c0_i32, %arg1 : i32, i32
  }
  func.func @transform_2(%arg0: i32, %arg1: i32) -> (i32, i32) {
    %c0_i32 = arith.constant 0 : i32
    return %arg0, %arg1 : i32, i32
  }
}

</mosaic_0001>

<llo_original>
// kernel: tpu_custom_call.1
$region0: #{tpu_custom_call.1}
  #allocation0 [shape = 'u32[]', space=smem, size = 0x4, offset = 0x4, fixed_abs, tag = 'smem constant byte address 0x4 - core index']
  #allocation1 [shape = 'u32[72,128]{1,0:T(1,128)}', space=vmem, size = 0x9000, scoped, tag = 'internal scratch']
  %s0 = inlined_call_operand.hbm [shape: f32[2,256], index: 0, kind: input, shape index: {}]
  %s1 = inlined_call_operand.hbm [shape: f32[1,256], index: 1, kind: input, shape index: {}]
  %s2 = inlined_call_operand.hbm [shape: f32[2,256], index: 2, kind: output, shape index: {}]
  %s3 = sld [smem:[#allocation0]]
  $region26: #{tpu_custom_call.1} parent=0
    _
  %s5 = ssub.s32 1, %s3
  %s6 = scalar_select 0, %s5, %s3
  $region1: #{tpu_custom_call.1} parent=0
    #allocation2 [shape = 'u8[2048]{0}', space=vmem, size = 0x800, scoped, tag = 'input window, operand 0, single buffered']
    #allocation3 [shape = 's32[1]{0}', space=sflag, size = 0x4, scoped, tag = 'scoped memory for tpu_custom_call.1']
    #allocation4 [shape = 's32[1]{0}', space=sflag, size = 0x4, scoped, tag = 'scoped memory for tpu_custom_call.1']
    #allocation5 [shape = 'u8[1024]{0}', space=vmem, size = 0x400, scoped, tag = 'input window, operand 1, single buffered']
    #allocation6 [shape = 's32[1]{0}', space=sflag, size = 0x4, scoped, tag = 'scoped memory for tpu_custom_call.1']
    #allocation7 [shape = 'u8[2048]{0}', space=vmem, size = 0x800, scoped, tag = 'output window, operand 0, single buffered']
    %7 = vsyncpa [#allocation3], 0
    %8 = vsyncpa [#allocation6], 0
    %9 = vsyncpa [#allocation4], 0
    // Predicated region
    $region2: #{tpu_custom_call.1} parent=1 // pred_check
      _
    $region3: #{tpu_custom_call.1} parent=1 // pred_check_branch
      %11 = sbr.rel (0) target = $region5
    $region4: #{tpu_custom_call.1} parent=1 // pred_region
      %13 = vsyncadd [#allocation3], 0
      %s15 = sshll.u32 %s0, 4
      %s16 = int_to_ptr.hbm [resolvable:$true] %s15
      %s17 = sshll.u32 [#allocation2], 4
      %s18 = int_to_ptr.vmem [resolvable:$true] %s17
      %20 = dma.hbm_to_vmem [thread:$0]  %s16, 64, %s18, [#allocation3]
    $region5: #{tpu_custom_call.1} parent=1 // pred_fallthru
      _
    // Predicated region
    $region6: #{tpu_custom_call.1} parent=1 // pred_check
      _
    $region7: #{tpu_custom_call.1} parent=1 // pred_check_branch
      %22 = sbr.rel (0) target = $region9
    $region8: #{tpu_custom_call.1} parent=1 // pred_region
      %24 = vsyncadd [#allocation6], 0
      %s26 = sshll.u32 %s1, 4
      %s27 = int_to_ptr.hbm [resolvable:$true] %s26
      %s28 = sshll.u32 [#allocation5], 4
      %s29 = int_to_ptr.vmem [resolvable:$true] %s28
      %31 = dma.hbm_to_vmem [thread:$0]  %s27, 32, %s29, [#allocation6]
    $region9: #{tpu_custom_call.1} parent=1 // pred_fallthru
      _
    // Predicated region
    $region10: #{tpu_custom_call.1} parent=1 // pred_check
      _
    $region11: #{tpu_custom_call.1} parent=1 // pred_check_branch
      %33 = sbr.rel (0) target = $region13
    $region12: #{tpu_custom_call.1} parent=1 // pred_region
      %35 = dma.done [#allocation3], 64
    $region13: #{tpu_custom_call.1} parent=1 // pred_fallthru
      _
    // Predicated region
    $region14: #{tpu_custom_call.1} parent=1 // pred_check
      _
    $region15: #{tpu_custom_call.1} parent=1 // pred_check_branch
      %37 = sbr.rel (0) target = $region17
    $region16: #{tpu_custom_call.1} parent=1 // pred_region
      %39 = dma.done [#allocation6], 32
    $region17: #{tpu_custom_call.1} parent=1 // pred_fallthru
      _
    %v40 = vld [vmem:[#allocation2] sm:$0xf]
    %v41 = vld [vmem:[#allocation5] sm:$0x3]
    %v43 = vperm.slane %v41, 0
    %v44 = vperm.slane %v41, 1
    %v45 = vrot.slane %v44, 6
    %vm46 = vcmask 1041408
    %v47 = vsel %vm46, %v43, %v45
    %v49 = vadd.f32 %v40, %v47
    %50 = vst [vmem:[#allocation7] sm:$0xf] %v49
    // Predicated region
    $region18: #{tpu_custom_call.1} parent=1 // pred_check
      _
    $region19: #{tpu_custom_call.1} parent=1 // pred_check_branch
      %52 = sbr.rel (0) target = $region21
    $region20: #{tpu_custom_call.1} parent=1 // pred_region
      %54 = vsyncadd [#allocation4], 0
      %s56 = sshll.u32 [#allocation7], 4
      %s57 = int_to_ptr.vmem [resolvable:$true] %s56
      %s58 = sshll.u32 %s2, 4
      %s59 = int_to_ptr.hbm [resolvable:$true] %s58
      %61 = dma.vmem_to_hbm [thread:$0]  %s57, 64, %s59, [#allocation4]
    $region21: #{tpu_custom_call.1} parent=1 // pred_fallthru
      _
    // Predicated region
    $region22: #{tpu_custom_call.1} parent=1 // pred_check
      _
    $region23: #{tpu_custom_call.1} parent=1 // pred_check_branch
      %63 = sbr.rel (0) target = $region25
    $region24: #{tpu_custom_call.1} parent=1 // pred_region
      %65 = dma.done [#allocation4], 64
    $region25: #{tpu_custom_call.1} parent=1 // pred_fallthru
      _
    %66 = vsyncpa [#allocation3], 1
    %67 = vsyncpa [#allocation6], 1
    %68 = vsyncpa [#allocation4], 1

</llo_original>
